<compile_context>
chip_gen: v7x
topology: tpu7x:2x2x1
jax: 0.10.0
libtpu: 0.0.40
codegen_flags: <defaults>
</compile_context>

<pallas_src>
import functools

import jax
import jax.numpy as jnp
from jax.experimental import pallas as pl
from jax.experimental.pallas import tpu as pltpu


# ---------------------------------------------------------------------------
# Kernels
# ---------------------------------------------------------------------------
def _linear_silu_kernel_noacc(x_ref, wt_ref, b_ref, o_ref):
    """Single-K-tile fast path: no accumulator needed."""
    y = jnp.dot(x_ref[...], wt_ref[...], preferred_element_type=jnp.float32)
    y = y + b_ref[...]                                  # bias is f32 (1, tn)
    o_ref[...] = (y * jax.nn.sigmoid(y)).astype(o_ref.dtype)


def _linear_silu_kernel_acc_scratch(x_ref, wt_ref, b_ref, o_ref, acc_ref):
    """K-split path for low-precision outputs: f32 VMEM accumulator."""
    k = pl.program_id(2)

    @pl.when(k == 0)
    def _():
        acc_ref[...] = jnp.zeros_like(acc_ref)

    acc_ref[...] += jnp.dot(
        x_ref[...], wt_ref[...], preferred_element_type=jnp.float32
    )

    @pl.when(k == pl.num_programs(2) - 1)
    def _():
        y = acc_ref[...] + b_ref[...]
        o_ref[...] = (y * jax.nn.sigmoid(y)).astype(o_ref.dtype)


def _linear_silu_kernel_acc_inplace(x_ref, wt_ref, b_ref, o_ref):
    """K-split path for f32 outputs: accumulate directly in the resident
    output block (saves tm*tn*4 bytes of VMEM and the acc->out copy)."""
    k = pl.program_id(2)

    @pl.when(k == 0)
    def _():
        o_ref[...] = jnp.zeros_like(o_ref)

    o_ref[...] += jnp.dot(
        x_ref[...], wt_ref[...], preferred_element_type=jnp.float32
    )

    @pl.when(k == pl.num_programs(2) - 1)
    def _():
        y = o_ref[...] + b_ref[...]
        o_ref[...] = y * jax.nn.sigmoid(y)


# ---------------------------------------------------------------------------
# One-time parameter preparation (call at model init, OUTSIDE the hot path)
# ---------------------------------------------------------------------------
def _round_up(x, m):
    return ((x + m - 1) // m) * m


def prepare_params(weight, bias, *, compute_dtype=jnp.bfloat16):
    """PyTorch weight [N, K], bias [N] (or None) -> (wt [Kp, Np], b [1, Np] f32).

    Transposes + casts the weight once (default bf16 for native MXU rate and
    half the HBM weight traffic) and zero-pads both N and K to multiples of
    128: lane-dense output stores, and no garbage in the K reduction tail.
    """
    weight = jnp.asarray(weight)
    n_out, k_in = weight.shape
    n_pad = _round_up(n_out, 128)
    k_pad = _round_up(k_in, 128)

    wt = weight.T.astype(compute_dtype)                  # [K, N], cast once here
    if bias is None:
        b = jnp.zeros((n_out,), jnp.float32)
    else:
        b = jnp.asarray(bias, jnp.float32)
    if (k_pad != k_in) or (n_pad != n_out):
        wt = jnp.pad(wt, ((0, k_pad - k_in), (0, n_pad - n_out)))
    if n_pad != n_out:
        b = jnp.pad(b, (0, n_pad - n_out))
    return wt, b.reshape(1, n_pad)


# ---------------------------------------------------------------------------
# Helpers
# ---------------------------------------------------------------------------
@functools.lru_cache(maxsize=1)
def _vmem_capacity_bytes():
    try:
        info = pltpu.get_tpu_info()
        cap = int(getattr(info, "vmem_capacity_bytes", 0))
        if cap > 0:
            return cap
    except Exception:
        pass
    return 128 * 1024 * 1024  # conservative default (v5e/v6e)


def _largest_dividing_tile(dim, target, align=128):
    """Largest multiple of `align` <= target that divides `dim` (dim % align == 0)."""
    if dim <= target:
        return dim
    if dim % align:
        return dim
    t = (target // align) * align
    while t >= align:
        if dim % t == 0:
            return t
        t -= align
    return align


# ---------------------------------------------------------------------------
# Hot-path wrapper
# ---------------------------------------------------------------------------
@functools.partial(jax.jit, static_argnames=("out_features", "tm", "tn", "tk"))
def linear_silu(x, wt, bias2d, *, out_features=None, tm=None, tn=None, tk=None):
    """silu(x @ wt + bias).  x: [..., K], wt: [Kp, Np] (pre-cast), bias2d: [1, Np] f32."""
    orig_shape = x.shape
    K = orig_shape[-1]
    Kp, Np = wt.shape
    assert Kp >= K and Kp - K < 128, f"weight K ({Kp}) incompatible with x K ({K})"
    bias2d = bias2d.reshape(1, Np)

    x2d = x.reshape(-1, K)
    M = x2d.shape[0]
    out_dtype = x.dtype

    # Activations cast to the (pre-cast) weight compute dtype.  The weight cast
    # itself happened once in prepare_params, outside the hot path.
    if x2d.dtype != wt.dtype:
        x2d = x2d.astype(wt.dtype)
    # Zero-pad K only when it is not already 128-aligned (rare for real models);
    # padded columns multiply zero weight rows, so results are exact.
    if Kp != K:
        x2d = jnp.pad(x2d, ((0, 0), (0, Kp - K)))

    vmem_cap = _vmem_capacity_bytes()
    big_vmem = vmem_cap >= 96 * 1024 * 1024      # v5e/v6e (128 MiB); v7x has 64 MiB
    small_m = M <= 256                           # decode / weight-BW-bound regime

    # ---- tile selection ----------------------------------------------------
    if tm is None:
        if small_m:
            tm = M                               # full extent, tiny
        else:
            tm = min(M, 1024 if big_vmem else 512)
            if tm < M and tm % 8:
                tm = _round_up(tm, 8)
    if tn is None:
        target_n = 1024 if small_m else (2048 if big_vmem else 1024)
        tn = min(Np, target_n)
    if tk is None:
        target_k = 2048 if small_m else 512      # decode: big K slabs -> few grid steps
        tk = _largest_dividing_tile(Kp, target_k, 128)

    gm = pl.cdiv(M, tm)
    gn = pl.cdiv(Np, tn)
    gk = Kp // tk                                # tk always divides Kp (no K tail)

    # v7x has 2 TensorCores: ensure >= 2 parallel blocks so both get work.
    # (On 1-TC parts the extra grid step costs ~0.35 us, negligible.)
    if gm * gn < 2 and Np >= 256:
        tn = max(128, ((Np // 2) // 128) * 128)
        gn = pl.cdiv(Np, tn)

    # ---- weight streaming depth --------------------------------------------
    w_bytes = jnp.dtype(wt.dtype).itemsize
    wt_bufs = 2
    wt_kwargs = {}
    wt_buf_budget = (24 if big_vmem else 12) * 1024 * 1024
    if small_m and gn * gk >= 3 and 3 * tk * tn * w_bytes <= wt_buf_budget:
        wt_kwargs["pipeline_mode"] = pl.Buffered(3)
        wt_bufs = 3

    # ---- VMEM budget (generation-aware ceiling) -----------------------------
    in_bytes = jnp.dtype(x2d.dtype).itemsize
    o_bytes = jnp.dtype(out_dtype).itemsize
    use_scratch = (gk > 1) and (jnp.dtype(out_dtype) != jnp.dtype(jnp.float32))
    est = (2 * tm * tk * in_bytes
           + wt_bufs * tk * tn * w_bytes
           + 2 * tm * tn * o_bytes
           + 2 * tn * 4
           + (tm * tn * 4 if use_scratch else 0))
    vmem_ceiling = (vmem_cap * 3) // 4           # ~48 MiB on v7x, ~96 MiB on v5e/v6e
    vmem_limit = int(min(max(int(est * 1.5), 32 * 1024 * 1024), vmem_ceiling))

    cost = pl.CostEstimate(
        flops=2 * M * Np * Kp,
        transcendentals=M * Np,
        bytes_accessed=(x2d.size * in_bytes + wt.size * w_bytes
                        + bias2d.size * 4 + M * Np * o_bytes),
    )

    # ---- grid / specs --------------------------------------------------------
    if gk > 1:
        grid = (gm, gn, gk)
        in_specs = [
            pl.BlockSpec((tm, tk), lambda i, j, k: (i, k)),                 # x
            pl.BlockSpec((tk, tn), lambda i, j, k: (k, j), **wt_kwargs),    # W^T
            pl.BlockSpec((1, tn), lambda i, j, k: (0, j)),                  # bias
        ]
        out_specs = pl.BlockSpec((tm, tn), lambda i, j, k: (i, j))
        dim_sem = ("parallel", "parallel", "arbitrary")
        if use_scratch:
            kernel = _linear_silu_kernel_acc_scratch
            scratch_shapes = [pltpu.VMEM((tm, tn), jnp.float32)]
        else:
            kernel = _linear_silu_kernel_acc_inplace
            scratch_shapes = []
    else:
        grid = (gm, gn)
        in_specs = [
            pl.BlockSpec((tm, tk), lambda i, j: (i, 0)),                    # x
            pl.BlockSpec((tk, tn), lambda i, j: (0, j), **wt_kwargs),       # W^T
            pl.BlockSpec((1, tn), lambda i, j: (0, j)),                     # bias
        ]
        out_specs = pl.BlockSpec((tm, tn), lambda i, j: (i, j))
        dim_sem = ("parallel", "parallel")
        kernel = _linear_silu_kernel_noacc
        scratch_shapes = []

    out = pl.pallas_call(
        kernel,
        out_shape=jax.ShapeDtypeStruct((M, Np), out_dtype),
        grid_spec=pltpu.PrefetchScalarGridSpec(
            num_scalar_prefetch=0,
            grid=grid,
            in_specs=in_specs,
            out_specs=out_specs,
            scratch_shapes=scratch_shapes,
        ),
        compiler_params=pltpu.CompilerParams(
            dimension_semantics=dim_sem,
            vmem_limit_bytes=vmem_limit,
        ),
        cost_estimate=cost,
    )(x2d, wt, bias2d)

    n_out = out_features if out_features is not None else Np
    if n_out != Np:
        out = out[:, :n_out]
    return out.reshape(*orig_shape[:-1], n_out)


# TODO(synk): the tpp / woq quantized fast paths of _IPEXlinearSiluCPU are
# CPU-library specific (choose_tpp_linear_weight / woq_linear_silu); only the
# canonical silu(linear(x)) math is implemented here.  (An fp8 weight path for
# v7x would slot into prepare_params + a scale epilogue, not implemented.)


if __name__ == "__main__":
    # Shapes implied by the module: Linear(in_features -> out_features) applied
    # to an activation x of shape [batch, seq, in_features].
    batch, seq, in_features, out_features = 2, 8, 32, 64
    dtype = jnp.float32

    key = jax.random.PRNGKey(0)
    kx, kw, kb = jax.random.split(key, 3)

    x = jax.random.normal(kx, (batch, seq, in_features), dtype=dtype)
    weight = jax.random.normal(kw, (out_features, in_features), dtype=dtype) * 0.05
    bias = jax.random.normal(kb, (out_features,), dtype=dtype) * 0.05

    ref = jax.nn.silu(jnp.einsum("bsk,nk->bsn", x, weight) + bias)

    # --- default (bf16 compute) path -----------------------------------------
    wt_bf16, b2d = prepare_params(weight, bias)            # one-time prep
    out = linear_silu(x, wt_bf16, b2d, out_features=out_features)
    out = jax.block_until_ready(out)
    assert out.shape == (batch, seq, out_features)
    assert jnp.allclose(out, ref, atol=2e-2, rtol=2e-2), "bf16 path mismatch"

    # --- f32 compute path, exercising the K-split accumulation kernel --------
    in_features2 = 256
    kx2, kw2, kb2 = jax.random.split(jax.random.PRNGKey(1), 3)
    x2 = jax.random.normal(kx2, (batch, seq, in_features2), dtype=dtype)
    weight2 = jax.random.normal(kw2, (out_features, in_features2), dtype=dtype) * 0.05
    bias2 = jax.random.normal(kb2, (out_features,), dtype=dtype) * 0.05
    wt_f32, b2d2 = prepare_params(weight2, bias2, compute_dtype=jnp.float32)
    out2 = linear_silu(x2, wt_f32, b2d2, out_features=out_features, tk=128)  # gk=2
    out2 = jax.block_until_ready(out2)
    ref2 = jax.nn.silu(jnp.einsum("bsk,nk->bsn", x2, weight2) + bias2)
    assert out2.shape == (batch, seq, out_features)
    assert jnp.allclose(out2, ref2, atol=1e-5, rtol=1e-5), "f32 K-split path mismatch"

    print("KERNEL_OK")
</pallas_src>

<mosaic_0001>
module attributes {stable_mosaic.version = 11 : i64} {
  func.func @_linear_silu_kernel_noacc(%arg0: i32, %arg1: i32, %arg2: memref<16x128xbf16, #tpu.memory_space<vmem>>, %arg3: memref<128x128xbf16, #tpu.memory_space<vmem>>, %arg4: memref<1x128xf32, #tpu.memory_space<vmem>>, %arg5: memref<16x128xf32, #tpu.memory_space<vmem>>) attributes {dimension_semantics = [#tpu.dimension_semantics<parallel>, #tpu.dimension_semantics<parallel>], iteration_bounds = array<i64: 1, 1>, scalar_prefetch = 0 : i64, scratch_operands = 0 : i64, tpu.core_type = #tpu.core_type<tc>, window_params = [{transform_indices = @transform_0, window_bounds = array<i64: 16, 128>}, {transform_indices = @transform_1, window_bounds = array<i64: 128, 128>}, {transform_indices = @transform_2, window_bounds = array<i64: 1, 128>}, {transform_indices = @transform_3, window_bounds = array<i64: 16, 128>}]} {
    %c0 = arith.constant 0 : index
    %c0_0 = arith.constant 0 : index
    %0 = vector.load %arg2[%c0, %c0_0] : memref<16x128xbf16, #tpu.memory_space<vmem>>, vector<16x128xbf16>
    %c0_1 = arith.constant 0 : index
    %c0_2 = arith.constant 0 : index
    %1 = vector.load %arg3[%c0_1, %c0_2] : memref<128x128xbf16, #tpu.memory_space<vmem>>, vector<128x128xbf16>
    %cst = arith.constant dense<0.000000e+00> : vector<16x128xf32>
    %2 = tpu.matmul %0, %1, %cst {dimension_numbers = #tpu.dot_dimension_numbers<[1], [0], [0], [1], [0, 0, 1, 1], [], []>} : vector<16x128xbf16>, vector<128x128xbf16>, vector<16x128xf32> -> vector<16x128xf32>
    %c0_3 = arith.constant 0 : index
    %c0_4 = arith.constant 0 : index
    %3 = vector.load %arg4[%c0_3, %c0_4] : memref<1x128xf32, #tpu.memory_space<vmem>>, vector<1x128xf32>
    %4 = vector.broadcast %3 : vector<1x128xf32> to vector<16x128xf32>
    %5 = arith.addf %2, %4 : vector<16x128xf32>
    %6 = arith.negf %5 : vector<16x128xf32>
    %7 = math.exp %6 : vector<16x128xf32>
    %cst_5 = arith.constant 1.000000e+00 : f32
    %8 = vector.broadcast %cst_5 : f32 to vector<16x128xf32>
    %9 = arith.addf %8, %7 : vector<16x128xf32>
    %10 = arith.divf %8, %9 : vector<16x128xf32>
    %11 = arith.mulf %5, %10 : vector<16x128xf32>
    %c0_6 = arith.constant 0 : index
    %c0_7 = arith.constant 0 : index
    %12 = vector.load %arg5[%c0_6, %c0_7] : memref<16x128xf32, #tpu.memory_space<vmem>>, vector<16x128xf32>
    tpu.vector_store %arg5[%c0_6, %c0_7], %11 {strides = array<i32>} : memref<16x128xf32, #tpu.memory_space<vmem>>, vector<16x128xf32>,
    return
  }
  func.func @transform_0(%arg0: i32, %arg1: i32) -> (i32, i32) {
    %c0_i32 = arith.constant 0 : i32
    %c0_i32_0 = arith.constant 0 : i32
    return %arg0, %c0_i32 : i32, i32
  }
  func.func @transform_1(%arg0: i32, %arg1: i32) -> (i32, i32) {
    %c0_i32 = arith.constant 0 : i32
    %c0_i32_0 = arith.constant 0 : i32
    return %c0_i32, %arg1 : i32, i32
  }
  func.func @transform_2(%arg0: i32, %arg1: i32) -> (i32, i32) {
    %c0_i32 = arith.constant 0 : i32
    %c0_i32_0 = arith.constant 0 : i32
    return %c0_i32, %arg1 : i32, i32
  }
  func.func @transform_3(%arg0: i32, %arg1: i32) -> (i32, i32) {
    %c0_i32 = arith.constant 0 : i32
    return %arg0, %arg1 : i32, i32
  }
}

</mosaic_0001>

<llo_original>
// kernel: linear_silu.1
$region0: #{linear_silu.1}
  #allocation0 [shape = 'u32[]', space=smem, size = 0x4, offset = 0x4, fixed_abs, tag = 'smem constant byte address 0x4 - core index']
  #allocation1 [shape = 'u32[144,128]{1,0:T(1,128)}', space=vmem, size = 0x12000, scoped, tag = 'internal scratch']
  %s0 = inlined_call_operand.vmem [shape: bf16[16,128], index: 0, kind: input, shape index: {}]
  %s1 = inlined_call_operand.hbm [shape: bf16[128,128], index: 1, kind: input, shape index: {}]
  %s2 = inlined_call_operand.vmem [shape: f32[1,128], index: 2, kind: input, shape index: {}]
  %s3 = inlined_call_operand.vmem [shape: f32[16,128], index: 3, kind: output, shape index: {}]
  %s4 = sld [smem:[#allocation0]]
  $region26: #{linear_silu.1} parent=0
    _
  %s6 = ssub.s32 1, %s4
  %s7 = scalar_select 0, %s6, %s4
  $region1: #{linear_silu.1} parent=0
    #allocation2 [shape = 'u8[32768]{0}', space=vmem, size = 0x8000, scoped, tag = 'input window, operand 1, single buffered']
    #allocation3 [shape = 's32[1]{0}', space=sflag, size = 0x4, scoped, tag = 'scoped memory for linear_silu.1']
    %8 = vsyncpa [#allocation3], 0
    // Predicated region
    $region2: #{linear_silu.1} parent=1 // pred_check
      _
    $region3: #{linear_silu.1} parent=1 // pred_check_branch
      %10 = sbr.rel (0) target = $region5
    $region4: #{linear_silu.1} parent=1 // pred_region
      _
    $region5: #{linear_silu.1} parent=1 // pred_fallthru
      _
    // Predicated region
    $region6: #{linear_silu.1} parent=1 // pred_check
      _
    $region7: #{linear_silu.1} parent=1 // pred_check_branch
      %12 = sbr.rel (0) target = $region9
    $region8: #{linear_silu.1} parent=1 // pred_region
      %s14 = ssub.s32 1024, 1024
      %15 = vsyncadd [#allocation3], %s14
      %s16 = sshll.u32 [#allocation2], 4
      %s17 = int_to_ptr.vmem [resolvable:$true] %s16
      %22 = dma.hbm_to_vmem [thread:$0]  %s1, 1024, %s17, [#allocation3], 64, 64, 4
    $region9: #{linear_silu.1} parent=1 // pred_fallthru
      _
    // Predicated region
    $region10: #{linear_silu.1} parent=1 // pred_check
      _
    $region11: #{linear_silu.1} parent=1 // pred_check_branch
      %24 = sbr.rel (0) target = $region13
    $region12: #{linear_silu.1} parent=1 // pred_region
      _
    $region13: #{linear_silu.1} parent=1 // pred_fallthru
      _
    // Predicated region
    $region14: #{linear_silu.1} parent=1 // pred_check
      _
    $region15: #{linear_silu.1} parent=1 // pred_check_branch
      %26 = sbr.rel (0) target = $region17
    $region16: #{linear_silu.1} parent=1 // pred_region
      %27 = dma.done [#allocation3], 1024
    $region17: #{linear_silu.1} parent=1 // pred_fallthru
      _
    %v29 = vld [vmem:[%s0] sm:$0xf]
    %v30 = vld [vmem:[%s0 + $0x4] sm:$0xf]
    %v31 = vld [vmem:[#allocation2] sm:$0xf]
    %v32 = vld [vmem:[#allocation2 + $0x4] sm:$0xf]
    %v33 = vld [vmem:[#allocation2 + $0x8] sm:$0xf]
    %v34 = vld [vmem:[#allocation2 + $0xc] sm:$0xf]
    %v35 = vld [vmem:[#allocation2 + $0x10] sm:$0xf]
    %v36 = vld [vmem:[#allocation2 + $0x14] sm:$0xf]
    %v37 = vld [vmem:[#allocation2 + $0x18] sm:$0xf]
    %v38 = vld [vmem:[#allocation2 + $0x1c] sm:$0xf]
    %v39 = vld [vmem:[#allocation2 + $0x20] sm:$0xf]
    %v40 = vld [vmem:[#allocation2 + $0x24] sm:$0xf]
    %v41 = vld [vmem:[#allocation2 + $0x28] sm:$0xf]
    %v42 = vld [vmem:[#allocation2 + $0x2c] sm:$0xf]
    %v43 = vld [vmem:[#allocation2 + $0x30] sm:$0xf]
    %v44 = vld [vmem:[#allocation2 + $0x34] sm:$0xf]
    %v45 = vld [vmem:[#allocation2 + $0x38] sm:$0xf]
    %v46 = vld [vmem:[#allocation2 + $0x3c] sm:$0xf]
    %v47 = vld [vmem:[%s2] sm:$0x1]
    %v49 = vlaneseq
    %v50 = vshrl.u32 %v49, 7
    %v51 = vsub.s32 0, %v50
    %v52 = vrot.slane %v47, %v51
    %v56 = vunpack.c.l.b16 %v29
    %v57 = vunpack.c.l.b16 %v30
    %v58 = vpack.c.b16 %v57, %v56
    %v76 = vunpack.c.l.b16 %v31
    %v77 = vunpack.c.l.b16 %v32
    %v78 = vunpack.c.l.b16 %v33
    %v79 = vunpack.c.l.b16 %v34
    %v80 = vunpack.c.l.b16 %v35
    %v81 = vunpack.c.l.b16 %v36
    %v82 = vunpack.c.l.b16 %v37
    %v83 = vunpack.c.l.b16 %v38
    %v84 = vunpack.c.l.b16 %v39
    %v85 = vunpack.c.l.b16 %v40
    %v86 = vunpack.c.l.b16 %v41
    %v87 = vunpack.c.l.b16 %v42
    %v88 = vunpack.c.l.b16 %v43
    %v89 = vunpack.c.l.b16 %v44
    %v90 = vunpack.c.l.b16 %v45
    %v91 = vunpack.c.l.b16 %v46
    %v92 = vpack.c.b16 %v77, %v76
    %v93 = vpack.c.b16 %v79, %v78
    %v94 = vpack.c.b16 %v81, %v80
    %v95 = vpack.c.b16 %v83, %v82
    %v96 = vpack.c.b16 %v85, %v84
    %v97 = vpack.c.b16 %v87, %v86
    %v98 = vpack.c.b16 %v89, %v88
    %v99 = vpack.c.b16 %v91, %v90
    %108 = vmatprep.subr.bf16.mxu0 0
    %109 = vmatpush1.bf16.msra.mxu0 %v92
    %110 = vmatprep.subr.bf16.mxu0 0
    %111 = vmatpush1.bf16.msra.mxu0 %v93
    %112 = vmatprep.subr.bf16.mxu0 0
    %113 = vmatpush1.bf16.msra.mxu0 %v94
    %114 = vmatprep.subr.bf16.mxu0 0
    %115 = vmatpush1.bf16.msra.mxu0 %v95
    %116 = vmatprep.subr.bf16.mxu0 0
    %117 = vmatpush1.bf16.msra.mxu0 %v96
    %118 = vmatprep.subr.bf16.mxu0 0
    %119 = vmatpush1.bf16.msra.mxu0 %v97
    %120 = vmatprep.subr.bf16.mxu0 0
    %121 = vmatpush1.bf16.msra.mxu0 %v98
    %122 = vmatprep.subr.bf16.mxu0 0
    %123 = vmatpush1.bf16.msra.mxu0 %v99
    %124 = vmatprep.subr.bf16.mxu0 0
    %125 = vmatpush1.bf16.msra.mxu0 0
    %126 = vmatprep.subr.bf16.mxu0 0
    %127 = vmatpush1.bf16.msra.mxu0 0
    %128 = vmatprep.subr.bf16.mxu0 0
    %129 = vmatpush1.bf16.msra.mxu0 0
    %130 = vmatprep.subr.bf16.mxu0 0
    %131 = vmatpush1.bf16.msra.mxu0 0
    %132 = vmatprep.subr.bf16.mxu0 0
    %133 = vmatpush1.bf16.msra.mxu0 0
    %134 = vmatprep.subr.bf16.mxu0 0
    %135 = vmatpush1.bf16.msra.mxu0 0
    %136 = vmatprep.subr.bf16.mxu0 0
    %137 = vmatpush1.bf16.msra.mxu0 0
    %138 = vmatprep.subr.bf16.mxu0 0
    %139 = vmatpush1.bf16.msra.mxu0 0
    %140 = vmatprep.mubr.bf16.mxu0 0
    %141 = vmatmul.mubr.bf16.gmra.mrb[0].mxu0 %v58
    %v142 = vpop.f32.mrb[0].mxu0
    %v143 = vadd.f32 %v52, %v142
    %v144 = vpop.f32.mrb[0].mxu0
    %v145 = vpop.f32.mrb[0].mxu0
    %v146 = vadd.f32 %v52, %v145
    %v147 = vpop.f32.mrb[0].mxu0
    %148 = vdwg.mxu0
    %v149 = vxor.u32 %v143, 2147483648
    %v150 = vxor.u32 %v146, 2147483648
    %v151 = vmul.f32 %v149, 1.442695
    %v152 = vpow.pop %v151
    %v153 = vmul.f32 %v150, 1.442695
    %v154 = vpow.pop %v153
    %v155 = vadd.f32 %v152, 1.0
    %v156 = vadd.f32 %v154, 1.0
    %v157 = vrcp.pop %v155
    %v158 = vmul.f32 1.0, %v157
    %v159 = vrcp.pop %v156
    %v160 = vmul.f32 1.0, %v159
    %v161 = vmul.f32 %v143, %v158
    %v162 = vmul.f32 %v146, %v160
    %163 = vst [vmem:[%s3] sm:$0xff] %v161
    %164 = vst [vmem:[%s3 + $0x8] sm:$0xff] %v162
    // Predicated region
    $region18: #{linear_silu.1} parent=1 // pred_check
      _
    $region19: #{linear_silu.1} parent=1 // pred_check_branch
      %166 = sbr.rel (0) target = $region21
    $region20: #{linear_silu.1} parent=1 // pred_region
      _
    $region21: #{linear_silu.1} parent=1 // pred_fallthru
      _
    // Predicated region
    $region22: #{linear_silu.1} parent=1 // pred_check
      _
    $region23: #{linear_silu.1} parent=1 // pred_check_branch
      %168 = sbr.rel (0) target = $region25
    $region24: #{linear_silu.1} parent=1 // pred_region
      _
    $region25: #{linear_silu.1} parent=1 // pred_fallthru
      _
    %169 = vsyncpa [#allocation3], 1

</llo_original>
